<compile_context>
chip_gen: v6e
topology: v6e:2x2x1
jax: 0.10.0
libtpu: 0.0.40
codegen_flags: <defaults>
</compile_context>

<pallas_src>
import functools

import jax
import jax.numpy as jnp
from jax import lax
from jax.experimental import pallas as pl
from jax.experimental.pallas import tpu as pltpu


# --- activation registry (mirrors ACTIVATIONS in the PyTorch file) -----------
# NOTE: feature zero-padding is only valid because every activation here maps
# 0 -> 0 (relu, tanh, exact-erf gelu). Guarded by an assert in the wrapper.
ACTIVATIONS = {
    "relu": lambda x: jnp.maximum(x, 0.0),
    "tanh": jnp.tanh,
    # exact erf formulation to match torch.nn.GELU's default
    "gelu": lambda x: jax.nn.gelu(x, approximate=False),
}
_ZERO_PRESERVING = ("relu", "tanh", "gelu")


def _round_up(x: int, m: int) -> int:
    return ((x + m - 1) // m) * m


# --- Pallas kernel ------------------------------------------------------------
def _basic_block_kernel(x_ref, w_ref, b_ref, o_ref, *, num_layers, act_name):
    """One batch tile of the forward pass (matmuls + activations + skip).

    x_ref: (TILE_B, Dp) input tile                       (VMEM, streamed)
    w_ref: (Dp, Dp) weight, ALREADY transposed to (in, out)  (VMEM, resident)
    b_ref: (1, Dp) bias                                  (VMEM, resident)
    o_ref: (TILE_B, Dp) output tile                      (VMEM, streamed)
    """
    act = ACTIVATIONS[act_name]
    tile_b, dp = x_ref.shape

    x = x_ref[...]
    w = w_ref[...]                                           # (in, out) layout
    # Hoist the bias broadcast out of the per-layer fc (no CSE of broadcast_in_dim).
    bias = jnp.broadcast_to(b_ref[...].astype(jnp.float32), (tile_b, dp))

    def fc(v):
        # Contraction on dim 0 of the pre-transposed weight -> plain jnp.dot,
        # no in-kernel XLU transpose of the Dp x Dp operand.
        return jnp.dot(v, w, preferred_element_type=jnp.float32) + bias

    out = fc(x)                                              # out = fc(x)

    def mid_layer(o):
        return fc(act(o).astype(w.dtype))

    n_mid = num_layers - 1
    if n_mid <= 8:
        # small depth: static unroll (demo uses num_layers=3)
        for _ in range(n_mid):
            out = mid_layer(out)
    else:
        # deep blocks: modest unroll keeps LLO scheduler visibility while
        # bounding vreg live ranges.
        out = lax.fori_loop(0, n_mid, lambda _, o: mid_layer(o), out, unroll=4)

    # skip connection + final activation (fp32), single cast on store
    out = act(out + x.astype(jnp.float32))
    o_ref[...] = out.astype(o_ref.dtype)


# --- wrapper ------------------------------------------------------------------
def basic_block_1d(x, weight, bias, *, num_layers, activation, tile_b=512):
    """x: (B, D); weight: (out_dim, in_dim) PyTorch-style; bias: (out_dim,)."""
    B, D = x.shape
    assert weight.shape == (D, D), "skip connection requires input_dim == output_dim"
    assert bias.shape == (D,)
    # Zero-padded feature columns stay exactly 0 only if act(0) == 0.
    assert activation in _ZERO_PRESERVING, (
        f"activation {activation!r} not supported with feature zero-padding")

    x_itemsize = jnp.dtype(x.dtype).itemsize
    w_itemsize = jnp.dtype(weight.dtype).itemsize

    # --- pad to TPU-friendly shapes -------------------------------------------
    # lanes: features -> multiple of 128 (unmasked stores, full MXU width)
    Dp = max(_round_up(D, 128), 128)
    # sublanes: batch tile -> multiple of the dtype's sublane granule
    sub = {4: 8, 2: 16, 1: 32}.get(x_itemsize, 8)

    # --- batch tiling: cap padding waste, keep >=2 tiles for v7x megacore ------
    B_sub = _round_up(B, sub)
    min_tiles = 2 if B_sub >= 256 else 1          # split only when there is real work
    n_tiles = max(-(-B_sub // max(tile_b, sub)), min_tiles)
    tile_b = _round_up(-(-B_sub // n_tiles), sub)
    Bp = n_tiles * tile_b

    # One wrapper-side transpose (single D^2 HBM pass, amortized over the batch);
    # the kernel then contracts on dim 0 -> no per-layer in-kernel transpose.
    w_t = weight.T
    x_p = jnp.pad(x, ((0, Bp - B), (0, Dp - D)))
    w_p = jnp.pad(w_t, ((0, Dp - D), (0, Dp - D)))
    b_p = jnp.pad(bias, (0, Dp - D)).reshape(1, Dp)
    # Zero padding is self-consistent: padded feature columns stay exactly 0
    # through every fc/act (relu/tanh/gelu all map 0 -> 0) and the skip add.

    kernel = functools.partial(
        _basic_block_kernel, num_layers=num_layers, act_name=activation)

    # --- VMEM budget (explicit limit so tiles are not starved by the default) --
    vmem_needed = (
        2 * tile_b * Dp * x_itemsize        # x tile, double-buffered
        + 2 * tile_b * Dp * x_itemsize      # out tile, double-buffered
        + Dp * Dp * w_itemsize              # weight (single-buffered request)
        + Dp * max(w_itemsize, 4)           # bias
        + 4 * tile_b * Dp * 4               # fp32 intermediates (acc, bias bcast, x_f32, tmp)
    )
    vmem_limit = min(int(vmem_needed * 1.25) + (2 << 20), 100 * 1024 * 1024)

    flops = 2 * num_layers * Bp * Dp * Dp
    transcendentals = 0 if activation == "relu" else num_layers * Bp * Dp
    bytes_accessed = 2 * Bp * Dp * x_itemsize + (Dp * Dp + Dp) * w_itemsize

    def _build(single_buffer_invariants: bool):
        if single_buffer_invariants:
            w_spec = pl.BlockSpec((Dp, Dp), lambda i: (0, 0),
                                  pipeline_mode=pl.Buffered(1))
            b_spec = pl.BlockSpec((1, Dp), lambda i: (0, 0),
                                  pipeline_mode=pl.Buffered(1))
        else:
            w_spec = pl.BlockSpec((Dp, Dp), lambda i: (0, 0))
            b_spec = pl.BlockSpec((1, Dp), lambda i: (0, 0))
        return pl.pallas_call(
            kernel,
            out_shape=jax.ShapeDtypeStruct((Bp, Dp), x.dtype),
            grid=(n_tiles,),
            in_specs=[
                pl.BlockSpec((tile_b, Dp), lambda i: (i, 0)),   # x: streamed per tile
                w_spec,                                         # weight: resident
                b_spec,                                         # bias: resident
            ],
            out_specs=pl.BlockSpec((tile_b, Dp), lambda i: (i, 0)),
            compiler_params=pltpu.CompilerParams(
                dimension_semantics=("parallel",),              # v7x: shard over 2 TCs
                vmem_limit_bytes=vmem_limit),
            cost_estimate=pl.CostEstimate(
                flops=flops,
                transcendentals=transcendentals,
                bytes_accessed=bytes_accessed),
        )

    try:
        # Preferred: single-buffer the grid-invariant weight/bias (halves the
        # dominant D*D VMEM cost — the lever that keeps this alive on v7x).
        out_p = _build(True)(x_p, w_p, b_p)
    except Exception:
        # Fallback for JAX versions without pipeline_mode support on pallas_call.
        out_p = _build(False)(x_p, w_p, b_p)

    return out_p[:B, :D]


# --- reference (pure JAX) for sanity ------------------------------------------
def basic_block_1d_ref(x, weight, bias, *, num_layers, activation):
    act = ACTIVATIONS[activation]
    fc = lambda v: v @ weight.T + bias
    out = fc(x)
    for _ in range(num_layers - 1):
        out = act(out)
        out = fc(out)
    out = out + x
    out = act(out)
    return out


if __name__ == "__main__":
    key = jax.random.PRNGKey(0)
    k_x, k_w, k_b = jax.random.split(key, 3)

    batch = 8
    input_dim = output_dim = 32
    num_layers = 3
    activation = "relu"

    x = jax.random.normal(k_x, (batch, input_dim), dtype=jnp.float32)
    # Deterministic "PyTorch-like" init: uniform(-1/sqrt(fan_in), 1/sqrt(fan_in))
    bound = 1.0 / jnp.sqrt(jnp.float32(input_dim))
    weight = jax.random.uniform(k_w, (output_dim, input_dim),
                                minval=-bound, maxval=bound, dtype=jnp.float32)
    bias = jax.random.uniform(k_b, (output_dim,),
                              minval=-bound, maxval=bound, dtype=jnp.float32)

    out = basic_block_1d(x, weight, bias,
                         num_layers=num_layers, activation=activation)
    out = jax.block_until_ready(out)

    ref = basic_block_1d_ref(x, weight, bias,
                             num_layers=num_layers, activation=activation)
    assert out.shape == (batch, output_dim)
    # fp32 in/out: kernel (fp32 accumulation) matches the fp32 reference tightly.
    assert jnp.allclose(out, ref, atol=1e-5, rtol=1e-5), "mismatch vs reference"

    print("KERNEL_OK")
</pallas_src>

<mosaic_0001>
module attributes {stable_mosaic.version = 11 : i64} {
  func.func @_basic_block_kernel(%arg0: i32, %arg1: memref<8x128xf32, #tpu.memory_space<vmem>>, %arg2: memref<128x128xf32, #tpu.memory_space<vmem>>, %arg3: memref<1x128xf32, #tpu.memory_space<vmem>>, %arg4: memref<8x128xf32, #tpu.memory_space<vmem>>) attributes {dimension_semantics = [#tpu.dimension_semantics<parallel>], iteration_bounds = array<i64: 1>, scalar_prefetch = 0 : i64, scratch_operands = 0 : i64, tpu.core_type = #tpu.core_type<tc>, window_params = [{transform_indices = @transform_0, window_bounds = array<i64: 8, 128>}, {pipeline_mode = #tpu.pipeline_mode<synchronous>, transform_indices = @transform_1, window_bounds = array<i64: 128, 128>}, {pipeline_mode = #tpu.pipeline_mode<synchronous>, transform_indices = @transform_2, window_bounds = array<i64: 1, 128>}, {transform_indices = @transform_3, window_bounds = array<i64: 8, 128>}]} {
    %c0 = arith.constant 0 : index
    %c0_0 = arith.constant 0 : index
    %0 = vector.load %arg1[%c0, %c0_0] : memref<8x128xf32, #tpu.memory_space<vmem>>, vector<8x128xf32>
    %c0_1 = arith.constant 0 : index
    %c0_2 = arith.constant 0 : index
    %1 = vector.load %arg2[%c0_1, %c0_2] : memref<128x128xf32, #tpu.memory_space<vmem>>, vector<128x128xf32>
    %c0_3 = arith.constant 0 : index
    %c0_4 = arith.constant 0 : index
    %2 = vector.load %arg3[%c0_3, %c0_4] : memref<1x128xf32, #tpu.memory_space<vmem>>, vector<1x128xf32>
    %3 = vector.shape_cast %2 : vector<1x128xf32> to vector<1x128xf32>
    %4 = vector.broadcast %3 : vector<1x128xf32> to vector<8x128xf32>
    %cst = arith.constant dense<0.000000e+00> : vector<8x128xf32>
    %5 = tpu.matmul %0, %1, %cst {dimension_numbers = #tpu.dot_dimension_numbers<[1], [0], [0], [1], [0, 0, 1, 1], [], []>} : vector<8x128xf32>, vector<128x128xf32>, vector<8x128xf32> -> vector<8x128xf32>
    %6 = arith.addf %5, %4 : vector<8x128xf32>
    %cst_5 = arith.constant 0.000000e+00 : f32
    %7 = vector.broadcast %cst_5 : f32 to vector<8x128xf32>
    %8 = arith.maximumf %6, %7 : vector<8x128xf32>
    %cst_6 = arith.constant dense<0.000000e+00> : vector<8x128xf32>
    %9 = tpu.matmul %8, %1, %cst_6 {dimension_numbers = #tpu.dot_dimension_numbers<[1], [0], [0], [1], [0, 0, 1, 1], [], []>} : vector<8x128xf32>, vector<128x128xf32>, vector<8x128xf32> -> vector<8x128xf32>
    %10 = arith.addf %9, %4 : vector<8x128xf32>
    %cst_7 = arith.constant 0.000000e+00 : f32
    %11 = vector.broadcast %cst_7 : f32 to vector<8x128xf32>
    %12 = arith.maximumf %10, %11 : vector<8x128xf32>
    %cst_8 = arith.constant dense<0.000000e+00> : vector<8x128xf32>
    %13 = tpu.matmul %12, %1, %cst_8 {dimension_numbers = #tpu.dot_dimension_numbers<[1], [0], [0], [1], [0, 0, 1, 1], [], []>} : vector<8x128xf32>, vector<128x128xf32>, vector<8x128xf32> -> vector<8x128xf32>
    %14 = arith.addf %13, %4 : vector<8x128xf32>
    %15 = arith.addf %14, %0 : vector<8x128xf32>
    %cst_9 = arith.constant 0.000000e+00 : f32
    %16 = vector.broadcast %cst_9 : f32 to vector<8x128xf32>
    %17 = arith.maximumf %15, %16 : vector<8x128xf32>
    %c0_10 = arith.constant 0 : index
    %c0_11 = arith.constant 0 : index
    %18 = vector.load %arg4[%c0_10, %c0_11] : memref<8x128xf32, #tpu.memory_space<vmem>>, vector<8x128xf32>
    tpu.vector_store %arg4[%c0_10, %c0_11], %17 {strides = array<i32>} : memref<8x128xf32, #tpu.memory_space<vmem>>, vector<8x128xf32>,
    return
  }
  func.func @transform_0(%arg0: i32) -> (i32, i32) {
    %c0_i32 = arith.constant 0 : i32
    %c0_i32_0 = arith.constant 0 : i32
    return %arg0, %c0_i32 : i32, i32
  }
  func.func @transform_1(%arg0: i32) -> (i32, i32) {
    %c0_i32 = arith.constant 0 : i32
    %c0_i32_0 = arith.constant 0 : i32
    %c0_i32_1 = arith.constant 0 : i32
    return %c0_i32, %c0_i32_0 : i32, i32
  }
  func.func @transform_2(%arg0: i32) -> (i32, i32) {
    %c0_i32 = arith.constant 0 : i32
    %c0_i32_0 = arith.constant 0 : i32
    %c0_i32_1 = arith.constant 0 : i32
    return %c0_i32, %c0_i32_0 : i32, i32
  }
  func.func @transform_3(%arg0: i32) -> (i32, i32) {
    %c0_i32 = arith.constant 0 : i32
    %c0_i32_0 = arith.constant 0 : i32
    return %arg0, %c0_i32 : i32, i32
  }
}

module attributes {stable_mosaic.version = 11 : i64} {
  func.func @_basic_block_kernel(%arg0: i32, %arg1: memref<8x128xf32, #tpu.memory_space<vmem>>, %arg2: memref<128x128xf32, #tpu.memory_space<vmem>>, %arg3: memref<1x128xf32, #tpu.memory_space<vmem>>, %arg4: memref<8x128xf32, #tpu.memory_space<vmem>>) attributes {dimension_semantics = [#tpu.dimension_semantics<parallel>], iteration_bounds = array<i64: 1>, scalar_prefetch = 0 : i64, scratch_operands = 0 : i64, tpu.core_type = #tpu.core_type<tc>, window_params = [{transform_indices = @transform_0, window_bounds = array<i64: 8, 128>}, {pipeline_mode = #tpu.pipeline_mode<synchronous>, transform_indices = @transform_1, window_bounds = array<i64: 128, 128>}, {pipeline_mode = #tpu.pipeline_mode<synchronous>, transform_indices = @transform_2, window_bounds = array<i64: 1, 128>}, {transform_indices = @transform_3, window_bounds = array<i64: 8, 128>}]} {
    %c0 = arith.constant 0 : index
    %c0_0 = arith.constant 0 : index
    %0 = vector.load %arg1[%c0, %c0_0] : memref<8x128xf32, #tpu.memory_space<vmem>>, vector<8x128xf32>
    %c0_1 = arith.constant 0 : index
    %c0_2 = arith.constant 0 : index
    %1 = vector.load %arg2[%c0_1, %c0_2] : memref<128x128xf32, #tpu.memory_space<vmem>>, vector<128x128xf32>
    %c0_3 = arith.constant 0 : index
    %c0_4 = arith.constant 0 : index
    %2 = vector.load %arg3[%c0_3, %c0_4] : memref<1x128xf32, #tpu.memory_space<vmem>>, vector<1x128xf32>
    %3 = vector.shape_cast %2 : vector<1x128xf32> to vector<1x128xf32>
    %4 = vector.broadcast %3 : vector<1x128xf32> to vector<8x128xf32>
    %cst = arith.constant dense<0.000000e+00> : vector<8x128xf32>
    %5 = tpu.matmul %0, %1, %cst {dimension_numbers = #tpu.dot_dimension_numbers<[1], [0], [0], [1], [0, 0, 1, 1], [], []>} : vector<8x128xf32>, vector<128x128xf32>, vector<8x128xf32> -> vector<8x128xf32>
    %6 = arith.addf %5, %4 : vector<8x128xf32>
    %cst_5 = arith.constant 0.000000e+00 : f32
    %7 = vector.broadcast %cst_5 : f32 to vector<8x128xf32>
    %8 = arith.maximumf %6, %7 : vector<8x128xf32>
    %cst_6 = arith.constant dense<0.000000e+00> : vector<8x128xf32>
    %9 = tpu.matmul %8, %1, %cst_6 {dimension_numbers = #tpu.dot_dimension_numbers<[1], [0], [0], [1], [0, 0, 1, 1], [], []>} : vector<8x128xf32>, vector<128x128xf32>, vector<8x128xf32> -> vector<8x128xf32>
    %10 = arith.addf %9, %4 : vector<8x128xf32>
    %cst_7 = arith.constant 0.000000e+00 : f32
    %11 = vector.broadcast %cst_7 : f32 to vector<8x128xf32>
    %12 = arith.maximumf %10, %11 : vector<8x128xf32>
    %cst_8 = arith.constant dense<0.000000e+00> : vector<8x128xf32>
    %13 = tpu.matmul %12, %1, %cst_8 {dimension_numbers = #tpu.dot_dimension_numbers<[1], [0], [0], [1], [0, 0, 1, 1], [], []>} : vector<8x128xf32>, vector<128x128xf32>, vector<8x128xf32> -> vector<8x128xf32>
    %14 = arith.addf %13, %4 : vector<8x128xf32>
    %15 = arith.addf %14, %0 : vector<8x128xf32>
    %cst_9 = arith.constant 0.000000e+00 : f32
    %16 = vector.broadcast %cst_9 : f32 to vector<8x128xf32>
    %17 = arith.maximumf %15, %16 : vector<8x128xf32>
    %c0_10 = arith.constant 0 : index
    %c0_11 = arith.constant 0 : index
    %18 = vector.load %arg4[%c0_10, %c0_11] : memref<8x128xf32, #tpu.memory_space<vmem>>, vector<8x128xf32>
    tpu.vector_store %arg4[%c0_10, %c0_11], %17 {strides = array<i32>} : memref<8x128xf32, #tpu.memory_space<vmem>>, vector<8x128xf32>,
    return
  }
  func.func @transform_0(%arg0: i32) -> (i32, i32) {
    %c0_i32 = arith.constant 0 : i32
    %c0_i32_0 = arith.constant 0 : i32
    return %arg0, %c0_i32 : i32, i32
  }
  func.func @transform_1(%arg0: i32) -> (i32, i32) {
    %c0_i32 = arith.constant 0 : i32
    %c0_i32_0 = arith.constant 0 : i32
    %c0_i32_1 = arith.constant 0 : i32
    return %c0_i32, %c0_i32_0 : i32, i32
  }
  func.func @transform_2(%arg0: i32) -> (i32, i32) {
    %c0_i32 = arith.constant 0 : i32
    %c0_i32_0 = arith.constant 0 : i32
    %c0_i32_1 = arith.constant 0 : i32
    return %c0_i32, %c0_i32_0 : i32, i32
  }
  func.func @transform_3(%arg0: i32) -> (i32, i32) {
    %c0_i32 = arith.constant 0 : i32
    %c0_i32_0 = arith.constant 0 : i32
    return %arg0, %c0_i32 : i32, i32
  }
}

</mosaic_0001>

<llo_original>
// kernel: tpu_custom_call.1
$region0: #{tpu_custom_call.1}
  #allocation0 [shape = 'u32[]', space=smem, size = 0x4, offset = 0x4, fixed_abs, tag = 'smem constant byte address 0x4 - core index']
  #allocation1 [shape = 'u32[144,128]{1,0:T(1,128)}', space=vmem, size = 0x12000, scoped, tag = 'internal scratch']
  %s0 = inlined_call_operand.hbm [shape: f32[8,128], index: 0, kind: input, shape index: {}]
  %s1 = inlined_call_operand.hbm [shape: f32[128,128], index: 1, kind: input, shape index: {}]
  %s2 = inlined_call_operand.vmem [shape: f32[1,128], index: 2, kind: input, shape index: {}]
  %s3 = inlined_call_operand.hbm [shape: f32[8,128], index: 3, kind: output, shape index: {}]
  %s4 = sld [smem:[#allocation0]]
  $region30: #{tpu_custom_call.1} parent=0
    _
  %s6 = ssub.s32 1, %s4
  %s7 = scalar_select 0, %s6, %s4
  $region1: #{tpu_custom_call.1} parent=0
    #allocation2 [shape = 'u8[4096]{0}', space=vmem, size = 0x1000, scoped, tag = 'input window, operand 0, single buffered']
    #allocation3 [shape = 's32[1]{0}', space=sflag, size = 0x4, scoped, tag = 'scoped memory for tpu_custom_call.1']
    #allocation4 [shape = 's32[1]{0}', space=sflag, size = 0x4, scoped, tag = 'scoped memory for tpu_custom_call.1']
    #allocation5 [shape = 'u8[65536]{0}', space=vmem, size = 0x10000, scoped, tag = 'input window, operand 1, single buffered']
    #allocation6 [shape = 's32[1]{0}', space=sflag, size = 0x4, scoped, tag = 'scoped memory for tpu_custom_call.1']
    #allocation7 [shape = 'u8[4096]{0}', space=vmem, size = 0x1000, scoped, tag = 'output window, operand 0, single buffered']
    %8 = vsyncpa [#allocation3], 0
    %9 = vsyncpa [#allocation6], 0
    %10 = vsyncpa [#allocation4], 0
    // Predicated region
    $region2: #{tpu_custom_call.1} parent=1 // pred_check
      _
    $region3: #{tpu_custom_call.1} parent=1 // pred_check_branch
      %12 = sbr.rel (0) target = $region5
    $region4: #{tpu_custom_call.1} parent=1 // pred_region
      %s14 = ssub.s32 128, 128
      %15 = vsyncadd [#allocation3], %s14
      %s17 = sshll.u32 [#allocation2], 4
      %s18 = int_to_ptr.vmem [resolvable:$true] %s17
      %20 = dma.hbm_to_vmem [thread:$0]  %s0, 128, %s18, [#allocation3]
    $region5: #{tpu_custom_call.1} parent=1 // pred_fallthru
      _
    // Predicated region
    $region6: #{tpu_custom_call.1} parent=1 // pred_check
      _
    $region7: #{tpu_custom_call.1} parent=1 // pred_check_branch
      %22 = sbr.rel (0) target = $region9
    $region8: #{tpu_custom_call.1} parent=1 // pred_region
      %s24 = ssub.s32 2048, 2048
      %25 = vsyncadd [#allocation6], %s24
      %s26 = sshll.u32 [#allocation5], 4
      %s27 = int_to_ptr.vmem [resolvable:$true] %s26
      %32 = dma.hbm_to_vmem [thread:$0]  %s1, 2048, %s27, [#allocation6], 128, 128, 8
    $region9: #{tpu_custom_call.1} parent=1 // pred_fallthru
      _
    // Predicated region
    $region10: #{tpu_custom_call.1} parent=1 // pred_check
      _
    $region11: #{tpu_custom_call.1} parent=1 // pred_check_branch
      %34 = sbr.rel (0) target = $region13
    $region12: #{tpu_custom_call.1} parent=1 // pred_region
      _
    $region13: #{tpu_custom_call.1} parent=1 // pred_fallthru
      _
    // Predicated region
    $region14: #{tpu_custom_call.1} parent=1 // pred_check
      _
    $region15: #{tpu_custom_call.1} parent=1 // pred_check_branch
      %36 = sbr.rel (0) target = $region17
    $region16: #{tpu_custom_call.1} parent=1 // pred_region
      %37 = dma.done [#allocation3], 128
    $region17: #{tpu_custom_call.1} parent=1 // pred_fallthru
      _
    // Predicated region
    $region18: #{tpu_custom_call.1} parent=1 // pred_check
      _
    $region19: #{tpu_custom_call.1} parent=1 // pred_check_branch
      %39 = sbr.rel (0) target = $region21
    $region20: #{tpu_custom_call.1} parent=1 // pred_region
      %40 = dma.done [#allocation6], 2048
    $region21: #{tpu_custom_call.1} parent=1 // pred_fallthru
      _
    %v41 = vld [vmem:[#allocation2] sm:$0xff]
    %v42 = vld [vmem:[#allocation5] sm:$0xff]
    %v43 = vld [vmem:[#allocation5 + $0x8] sm:$0xff]
    %v44 = vld [vmem:[#allocation5 + $0x10] sm:$0xff]
    %v45 = vld [vmem:[#allocation5 + $0x18] sm:$0xff]
    %v46 = vld [vmem:[#allocation5 + $0x20] sm:$0xff]
    %v47 = vld [vmem:[#allocation5 + $0x28] sm:$0xff]
    %v48 = vld [vmem:[#allocation5 + $0x30] sm:$0xff]
    %v49 = vld [vmem:[#allocation5 + $0x38] sm:$0xff]
    %v50 = vld [vmem:[#allocation5 + $0x40] sm:$0xff]
    %v51 = vld [vmem:[#allocation5 + $0x48] sm:$0xff]
    %v52 = vld [vmem:[#allocation5 + $0x50] sm:$0xff]
    %v53 = vld [vmem:[#allocation5 + $0x58] sm:$0xff]
    %v54 = vld [vmem:[#allocation5 + $0x60] sm:$0xff]
    %v55 = vld [vmem:[#allocation5 + $0x68] sm:$0xff]
    %v56 = vld [vmem:[#allocation5 + $0x70] sm:$0xff]
    %v57 = vld [vmem:[#allocation5 + $0x78] sm:$0xff]
    %v58 = vld [vmem:[%s2] sm:$0x1]
    %v60 = vlaneseq
    %v61 = vshrl.u32 %v60, 7
    %v62 = vsub.s32 0, %v61
    %v63 = vrot.slane %v58, %v62
    %65 = vmatprep.subr.mxu0 0.0
    %66 = vmatpush1.msra.mxu0 %v57
    %67 = vmatprep.subr.mxu0 0.0
    %68 = vmatpush1.msra.mxu0 %v56
    %69 = vmatprep.subr.mxu0 0.0
    %70 = vmatpush1.msra.mxu0 %v55
    %71 = vmatprep.subr.mxu0 0.0
    %72 = vmatpush1.msra.mxu0 %v54
    %73 = vmatprep.subr.mxu0 0.0
    %74 = vmatpush1.msra.mxu0 %v53
    %75 = vmatprep.subr.mxu0 0.0
    %76 = vmatpush1.msra.mxu0 %v52
    %77 = vmatprep.subr.mxu0 0.0
    %78 = vmatpush1.msra.mxu0 %v51
    %79 = vmatprep.subr.mxu0 0.0
    %80 = vmatpush1.msra.mxu0 %v50
    %81 = vmatprep.subr.mxu0 0.0
    %82 = vmatpush1.msra.mxu0 %v49
    %83 = vmatprep.subr.mxu0 0.0
    %84 = vmatpush1.msra.mxu0 %v48
    %85 = vmatprep.subr.mxu0 0.0
    %86 = vmatpush1.msra.mxu0 %v47
    %87 = vmatprep.subr.mxu0 0.0
    %88 = vmatpush1.msra.mxu0 %v46
    %89 = vmatprep.subr.mxu0 0.0
    %90 = vmatpush1.msra.mxu0 %v45
    %91 = vmatprep.subr.mxu0 0.0
    %92 = vmatpush1.msra.mxu0 %v44
    %93 = vmatprep.subr.mxu0 0.0
    %94 = vmatpush1.msra.mxu0 %v43
    %95 = vmatprep.subr.mxu0 0.0
    %96 = vmatpush1.msra.mxu0 %v42
    %97 = vmatprep.subr.mxu0 0.0
    %98 = vmatpush2.msra.mxu0 0.0
    %99 = vmatprep.subr.mxu0 0.0
    %100 = vmatpush2.msra.mxu0 0.0
    %101 = vmatprep.subr.mxu0 0.0
    %102 = vmatpush2.msra.mxu0 0.0
    %103 = vmatprep.subr.mxu0 0.0
    %104 = vmatpush2.msra.mxu0 0.0
    %105 = vmatprep.subr.mxu0 0.0
    %106 = vmatpush2.msra.mxu0 0.0
    %107 = vmatprep.subr.mxu0 0.0
    %108 = vmatpush2.msra.mxu0 0.0
    %109 = vmatprep.subr.mxu0 0.0
    %110 = vmatpush2.msra.mxu0 0.0
    %111 = vmatprep.subr.mxu0 0.0
    %112 = vmatpush2.msra.mxu0 0.0
    %113 = vmatprep.subr.mxu0 0.0
    %114 = vmatpush2.msra.mxu0 0.0
    %115 = vmatprep.subr.mxu0 0.0
    %116 = vmatpush2.msra.mxu0 0.0
    %117 = vmatprep.subr.mxu0 0.0
    %118 = vmatpush2.msra.mxu0 0.0
    %119 = vmatprep.subr.mxu0 0.0
    %120 = vmatpush2.msra.mxu0 0.0
    %121 = vmatprep.subr.mxu0 0.0
    %122 = vmatpush2.msra.mxu0 0.0
    %123 = vmatprep.subr.mxu0 0.0
    %124 = vmatpush2.msra.mxu0 0.0
    %125 = vmatprep.subr.mxu0 0.0
    %126 = vmatpush2.msra.mxu0 0.0
    %127 = vmatprep.subr.mxu0 0.0
    %128 = vmatpush2.msra.mxu0 0.0
    %129 = vmatprep.mubr.f32.mxu0 0.0
    %130 = vmatmul.mubr.f32.gmra.mxu0 %v41
    %v131 = vpop.f32.mrf.mxu0
    %v132 = vadd.f32 %v63, %v131
    %v133 = vpop.f32.mrf.mxu0
    %134 = vdwg.mxu0
    %v135 = vmax.f32 %v132, 0.0
    %136 = vmatprep.subr.mxu0 0.0
    %137 = vmatpush1.msra.mxu0 %v57
    %138 = vmatprep.subr.mxu0 0.0
    %139 = vmatpush1.msra.mxu0 %v56
    %140 = vmatprep.subr.mxu0 0.0
    %141 = vmatpush1.msra.mxu0 %v55
    %142 = vmatprep.subr.mxu0 0.0
    %143 = vmatpush1.msra.mxu0 %v54
    %144 = vmatprep.subr.mxu0 0.0
    %145 = vmatpush1.msra.mxu0 %v53
    %146 = vmatprep.subr.mxu0 0.0
    %147 = vmatpush1.msra.mxu0 %v52
    %148 = vmatprep.subr.mxu0 0.0
    %149 = vmatpush1.msra.mxu0 %v51
    %150 = vmatprep.subr.mxu0 0.0
    %151 = vmatpush1.msra.mxu0 %v50
    %152 = vmatprep.subr.mxu0 0.0
    %153 = vmatpush1.msra.mxu0 %v49
    %154 = vmatprep.subr.mxu0 0.0
    %155 = vmatpush1.msra.mxu0 %v48
    %156 = vmatprep.subr.mxu0 0.0
    %157 = vmatpush1.msra.mxu0 %v47
    %158 = vmatprep.subr.mxu0 0.0
    %159 = vmatpush1.msra.mxu0 %v46
    %160 = vmatprep.subr.mxu0 0.0
    %161 = vmatpush1.msra.mxu0 %v45
    %162 = vmatprep.subr.mxu0 0.0
    %163 = vmatpush1.msra.mxu0 %v44
    %164 = vmatprep.subr.mxu0 0.0
    %165 = vmatpush1.msra.mxu0 %v43
    %166 = vmatprep.subr.mxu0 0.0
    %167 = vmatpush1.msra.mxu0 %v42
    %168 = vmatprep.subr.mxu0 0.0
    %169 = vmatpush2.msra.mxu0 0.0
    %170 = vmatprep.subr.mxu0 0.0
    %171 = vmatpush2.msra.mxu0 0.0
    %172 = vmatprep.subr.mxu0 0.0
    %173 = vmatpush2.msra.mxu0 0.0
    %174 = vmatprep.subr.mxu0 0.0
    %175 = vmatpush2.msra.mxu0 0.0
    %176 = vmatprep.subr.mxu0 0.0
    %177 = vmatpush2.msra.mxu0 0.0
    %178 = vmatprep.subr.mxu0 0.0
    %179 = vmatpush2.msra.mxu0 0.0
    %180 = vmatprep.subr.mxu0 0.0
    %181 = vmatpush2.msra.mxu0 0.0
    %182 = vmatprep.subr.mxu0 0.0
    %183 = vmatpush2.msra.mxu0 0.0
    %184 = vmatprep.subr.mxu0 0.0
    %185 = vmatpush2.msra.mxu0 0.0
    %186 = vmatprep.subr.mxu0 0.0
    %187 = vmatpush2.msra.mxu0 0.0
    %188 = vmatprep.subr.mxu0 0.0
    %189 = vmatpush2.msra.mxu0 0.0
    %190 = vmatprep.subr.mxu0 0.0
    %191 = vmatpush2.msra.mxu0 0.0
    %192 = vmatprep.subr.mxu0 0.0
    %193 = vmatpush2.msra.mxu0 0.0
    %194 = vmatprep.subr.mxu0 0.0
    %195 = vmatpush2.msra.mxu0 0.0
    %196 = vmatprep.subr.mxu0 0.0
    %197 = vmatpush2.msra.mxu0 0.0
    %198 = vmatprep.subr.mxu0 0.0
    %199 = vmatpush2.msra.mxu0 0.0
    %200 = vmatprep.mubr.f32.mxu0 0.0
    %201 = vmatmul.mubr.f32.gmra.mxu0 %v135
    %v202 = vpop.f32.mrf.mxu0
    %v203 = vadd.f32 %v63, %v202
    %v204 = vpop.f32.mrf.mxu0
    %205 = vdwg.mxu0
    %v206 = vmax.f32 %v203, 0.0
    %207 = vmatprep.subr.mxu0 0.0
    %208 = vmatpush1.msra.mxu0 %v57
    %209 = vmatprep.subr.mxu0 0.0
    %210 = vmatpush1.msra.mxu0 %v56
    %211 = vmatprep.subr.mxu0 0.0
    %212 = vmatpush1.msra.mxu0 %v55
    %213 = vmatprep.subr.mxu0 0.0
    %214 = vmatpush1.msra.mxu0 %v54
    %215 = vmatprep.subr.mxu0 0.0
    %216 = vmatpush1.msra.mxu0 %v53
    %217 = vmatprep.subr.mxu0 0.0
    %218 = vmatpush1.msra.mxu0 %v52
    %219 = vmatprep.subr.mxu0 0.0
    %220 = vmatpush1.msra.mxu0 %v51
    %221 = vmatprep.subr.mxu0 0.0
    %222 = vmatpush1.msra.mxu0 %v50
    %223 = vmatprep.subr.mxu0 0.0
    %224 = vmatpush1.msra.mxu0 %v49
    %225 = vmatprep.subr.mxu0 0.0
    %226 = vmatpush1.msra.mxu0 %v48
    %227 = vmatprep.subr.mxu0 0.0
    %228 = vmatpush1.msra.mxu0 %v47
    %229 = vmatprep.subr.mxu0 0.0
    %230 = vmatpush1.msra.mxu0 %v46
    %231 = vmatprep.subr.mxu0 0.0
    %232 = vmatpush1.msra.mxu0 %v45
    %233 = vmatprep.subr.mxu0 0.0
    %234 = vmatpush1.msra.mxu0 %v44
    %235 = vmatprep.subr.mxu0 0.0
    %236 = vmatpush1.msra.mxu0 %v43
    %237 = vmatprep.subr.mxu0 0.0
    %238 = vmatpush1.msra.mxu0 %v42
    %239 = vmatprep.subr.mxu0 0.0
    %240 = vmatpush2.msra.mxu0 0.0
    %241 = vmatprep.subr.mxu0 0.0
    %242 = vmatpush2.msra.mxu0 0.0
    %243 = vmatprep.subr.mxu0 0.0
    %244 = vmatpush2.msra.mxu0 0.0
    %245 = vmatprep.subr.mxu0 0.0
    %246 = vmatpush2.msra.mxu0 0.0
    %247 = vmatprep.subr.mxu0 0.0
    %248 = vmatpush2.msra.mxu0 0.0
    %249 = vmatprep.subr.mxu0 0.0
    %250 = vmatpush2.msra.mxu0 0.0
    %251 = vmatprep.subr.mxu0 0.0
    %252 = vmatpush2.msra.mxu0 0.0
    %253 = vmatprep.subr.mxu0 0.0
    %254 = vmatpush2.msra.mxu0 0.0
    %255 = vmatprep.subr.mxu0 0.0
    %256 = vmatpush2.msra.mxu0 0.0
    %257 = vmatprep.subr.mxu0 0.0
    %258 = vmatpush2.msra.mxu0 0.0
    %259 = vmatprep.subr.mxu0 0.0
    %260 = vmatpush2.msra.mxu0 0.0
    %261 = vmatprep.subr.mxu0 0.0
    %262 = vmatpush2.msra.mxu0 0.0
    %263 = vmatprep.subr.mxu0 0.0
    %264 = vmatpush2.msra.mxu0 0.0
    %265 = vmatprep.subr.mxu0 0.0
    %266 = vmatpush2.msra.mxu0 0.0
    %267 = vmatprep.subr.mxu0 0.0
    %268 = vmatpush2.msra.mxu0 0.0
    %269 = vmatprep.subr.mxu0 0.0
    %270 = vmatpush2.msra.mxu0 0.0
    %271 = vmatprep.mubr.f32.mxu0 0.0
    %272 = vmatmul.mubr.f32.gmra.mxu0 %v206
    %v273 = vpop.f32.mrf.mxu0
    %v274 = vadd.f32 %v63, %v273
    %v275 = vpop.f32.mrf.mxu0
    %276 = vdwg.mxu0
    %v277 = vadd.f32 %v274, %v41
    %v278 = vmax.f32 %v277, 0.0
    %279 = vst [vmem:[#allocation7] sm:$0xff] %v278
    // Predicated region
    $region22: #{tpu_custom_call.1} parent=1 // pred_check
      _
    $region23: #{tpu_custom_call.1} parent=1 // pred_check_branch
      %281 = sbr.rel (0) target = $region25
    $region24: #{tpu_custom_call.1} parent=1 // pred_region
      %s283 = ssub.s32 128, 128
      %284 = vsyncadd [#allocation4], %s283
      %s286 = sshll.u32 [#allocation7], 4
      %s287 = int_to_ptr.vmem [resolvable:$true] %s286
      %289 = dma.vmem_to_hbm [thread:$0]  %s287, 128, %s3, [#allocation4]
    $region25: #{tpu_custom_call.1} parent=1 // pred_fallthru
      _
    // Predicated region
    $region26: #{tpu_custom_call.1} parent=1 // pred_check
      _
    $region27: #{tpu_custom_call.1} parent=1 // pred_check_branch
      %291 = sbr.rel (0) target = $region29
    $region28: #{tpu_custom_call.1} parent=1 // pred_region
      %292 = dma.done [#allocation4], 128
    $region29: #{tpu_custom_call.1} parent=1 // pred_fallthru
      _
    %293 = vsyncpa [#allocation3], 1
    %294 = vsyncpa [#allocation6], 1
    %295 = vsyncpa [#allocation4], 1

// kernel: tpu_custom_call.1
$region0: #{tpu_custom_call.1}
  #allocation0 [shape = 'u32[]', space=smem, size = 0x4, offset = 0x4, fixed_abs, tag = 'smem constant byte address 0x4 - core index']
  #allocation1 [shape = 'u32[144,128]{1,0:T(1,128)}', space=vmem, size = 0x12000, scoped, tag = 'internal scratch']
  %s0 = inlined_call_operand.hbm [shape: f32[8,128], index: 0, kind: input, shape index: {}]
  %s1 = inlined_call_operand.hbm [shape: f32[128,128], index: 1, kind: input, shape index: {}]
  %s2 = inlined_call_operand.vmem [shape: f32[1,128], index: 2, kind: input, shape index: {}]
  %s3 = inlined_call_operand.hbm [shape: f32[8,128], index: 3, kind: output, shape index: {}]
  %s4 = sld [smem:[#allocation0]]
  $region30: #{tpu_custom_call.1} parent=0
    _
  %s6 = ssub.s32 1, %s4
  %s7 = scalar_select 0, %s6, %s4
  $region1: #{tpu_custom_call.1} parent=0
    #allocation2 [shape = 'u8[4096]{0}', space=vmem, size = 0x1000, scoped, tag = 'input window, operand 0, single buffered']
    #allocation3 [shape = 's32[1]{0}', space=sflag, size = 0x4, scoped, tag = 'scoped memory for tpu_custom_call.1']
    #allocation4 [shape = 's32[1]{0}', space=sflag, size = 0x4, scoped, tag = 'scoped memory for tpu_custom_call.1']
    #allocation5 [shape = 'u8[65536]{0}', space=vmem, size = 0x10000, scoped, tag = 'input window, operand 1, single buffered']
    #allocation6 [shape = 's32[1]{0}', space=sflag, size = 0x4, scoped, tag = 'scoped memory for tpu_custom_call.1']
    #allocation7 [shape = 'u8[4096]{0}', space=vmem, size = 0x1000, scoped, tag = 'output window, operand 0, single buffered']
    %8 = vsyncpa [#allocation3], 0
    %9 = vsyncpa [#allocation6], 0
    %10 = vsyncpa [#allocation4], 0
    // Predicated region
    $region2: #{tpu_custom_call.1} parent=1 // pred_check
      _
    $region3: #{tpu_custom_call.1} parent=1 // pred_check_branch
      %12 = sbr.rel (0) target = $region5
    $region4: #{tpu_custom_call.1} parent=1 // pred_region
      %s14 = ssub.s32 128, 128
      %15 = vsyncadd [#allocation3], %s14
      %s17 = sshll.u32 [#allocation2], 4
      %s18 = int_to_ptr.vmem [resolvable:$true] %s17
      %20 = dma.hbm_to_vmem [thread:$0]  %s0, 128, %s18, [#allocation3]
    $region5: #{tpu_custom_call.1} parent=1 // pred_fallthru
      _
    // Predicated region
    $region6: #{tpu_custom_call.1} parent=1 // pred_check
      _
    $region7: #{tpu_custom_call.1} parent=1 // pred_check_branch
      %22 = sbr.rel (0) target = $region9
    $region8: #{tpu_custom_call.1} parent=1 // pred_region
      %s24 = ssub.s32 2048, 2048
      %25 = vsyncadd [#allocation6], %s24
      %s26 = sshll.u32 [#allocation5], 4
      %s27 = int_to_ptr.vmem [resolvable:$true] %s26
      %32 = dma.hbm_to_vmem [thread:$0]  %s1, 2048, %s27, [#allocation6], 128, 128, 8
    $region9: #{tpu_custom_call.1} parent=1 // pred_fallthru
      _
    // Predicated region
    $region10: #{tpu_custom_call.1} parent=1 // pred_check
      _
    $region11: #{tpu_custom_call.1} parent=1 // pred_check_branch
      %34 = sbr.rel (0) target = $region13
    $region12: #{tpu_custom_call.1} parent=1 // pred_region
      _
    $region13: #{tpu_custom_call.1} parent=1 // pred_fallthru
      _
    // Predicated region
    $region14: #{tpu_custom_call.1} parent=1 // pred_check
      _
    $region15: #{tpu_custom_call.1} parent=1 // pred_check_branch
      %36 = sbr.rel (0) target = $region17
    $region16: #{tpu_custom_call.1} parent=1 // pred_region
      %37 = dma.done [#allocation3], 128
    $region17: #{tpu_custom_call.1} parent=1 // pred_fallthru
      _
    // Predicated region
    $region18: #{tpu_custom_call.1} parent=1 // pred_check
      _
    $region19: #{tpu_custom_call.1} parent=1 // pred_check_branch
      %39 = sbr.rel (0) target = $region21
    $region20: #{tpu_custom_call.1} parent=1 // pred_region
      %40 = dma.done [#allocation6], 2048
    $region21: #{tpu_custom_call.1} parent=1 // pred_fallthru
      _
    %v41 = vld [vmem:[#allocation2] sm:$0xff]
    %v42 = vld [vmem:[#allocation5] sm:$0xff]
    %v43 = vld [vmem:[#allocation5 + $0x8] sm:$0xff]
    %v44 = vld [vmem:[#allocation5 + $0x10] sm:$0xff]
    %v45 = vld [vmem:[#allocation5 + $0x18] sm:$0xff]
    %v46 = vld [vmem:[#allocation5 + $0x20] sm:$0xff]
    %v47 = vld [vmem:[#allocation5 + $0x28] sm:$0xff]
    %v48 = vld [vmem:[#allocation5 + $0x30] sm:$0xff]
    %v49 = vld [vmem:[#allocation5 + $0x38] sm:$0xff]
    %v50 = vld [vmem:[#allocation5 + $0x40] sm:$0xff]
    %v51 = vld [vmem:[#allocation5 + $0x48] sm:$0xff]
    %v52 = vld [vmem:[#allocation5 + $0x50] sm:$0xff]
    %v53 = vld [vmem:[#allocation5 + $0x58] sm:$0xff]
    %v54 = vld [vmem:[#allocation5 + $0x60] sm:$0xff]
    %v55 = vld [vmem:[#allocation5 + $0x68] sm:$0xff]
    %v56 = vld [vmem:[#allocation5 + $0x70] sm:$0xff]
    %v57 = vld [vmem:[#allocation5 + $0x78] sm:$0xff]
    %v58 = vld [vmem:[%s2] sm:$0x1]
    %v60 = vlaneseq
    %v61 = vshrl.u32 %v60, 7
    %v62 = vsub.s32 0, %v61
    %v63 = vrot.slane %v58, %v62
    %65 = vmatprep.subr.mxu0 0.0
    %66 = vmatpush1.msra.mxu0 %v57
    %67 = vmatprep.subr.mxu0 0.0
    %68 = vmatpush1.msra.mxu0 %v56
    %69 = vmatprep.subr.mxu0 0.0
    %70 = vmatpush1.msra.mxu0 %v55
    %71 = vmatprep.subr.mxu0 0.0
    %72 = vmatpush1.msra.mxu0 %v54
    %73 = vmatprep.subr.mxu0 0.0
    %74 = vmatpush1.msra.mxu0 %v53
    %75 = vmatprep.subr.mxu0 0.0
    %76 = vmatpush1.msra.mxu0 %v52
    %77 = vmatprep.subr.mxu0 0.0
    %78 = vmatpush1.msra.mxu0 %v51
    %79 = vmatprep.subr.mxu0 0.0
    %80 = vmatpush1.msra.mxu0 %v50
    %81 = vmatprep.subr.mxu0 0.0
    %82 = vmatpush1.msra.mxu0 %v49
    %83 = vmatprep.subr.mxu0 0.0
    %84 = vmatpush1.msra.mxu0 %v48
    %85 = vmatprep.subr.mxu0 0.0
    %86 = vmatpush1.msra.mxu0 %v47
    %87 = vmatprep.subr.mxu0 0.0
    %88 = vmatpush1.msra.mxu0 %v46
    %89 = vmatprep.subr.mxu0 0.0
    %90 = vmatpush1.msra.mxu0 %v45
    %91 = vmatprep.subr.mxu0 0.0
    %92 = vmatpush1.msra.mxu0 %v44
    %93 = vmatprep.subr.mxu0 0.0
    %94 = vmatpush1.msra.mxu0 %v43
    %95 = vmatprep.subr.mxu0 0.0
    %96 = vmatpush1.msra.mxu0 %v42
    %97 = vmatprep.subr.mxu0 0.0
    %98 = vmatpush2.msra.mxu0 0.0
    %99 = vmatprep.subr.mxu0 0.0
    %100 = vmatpush2.msra.mxu0 0.0
    %101 = vmatprep.subr.mxu0 0.0
    %102 = vmatpush2.msra.mxu0 0.0
    %103 = vmatprep.subr.mxu0 0.0
    %104 = vmatpush2.msra.mxu0 0.0
    %105 = vmatprep.subr.mxu0 0.0
    %106 = vmatpush2.msra.mxu0 0.0
    %107 = vmatprep.subr.mxu0 0.0
    %108 = vmatpush2.msra.mxu0 0.0
    %109 = vmatprep.subr.mxu0 0.0
    %110 = vmatpush2.msra.mxu0 0.0
    %111 = vmatprep.subr.mxu0 0.0
    %112 = vmatpush2.msra.mxu0 0.0
    %113 = vmatprep.subr.mxu0 0.0
    %114 = vmatpush2.msra.mxu0 0.0
    %115 = vmatprep.subr.mxu0 0.0
    %116 = vmatpush2.msra.mxu0 0.0
    %117 = vmatprep.subr.mxu0 0.0
    %118 = vmatpush2.msra.mxu0 0.0
    %119 = vmatprep.subr.mxu0 0.0
    %120 = vmatpush2.msra.mxu0 0.0
    %121 = vmatprep.subr.mxu0 0.0
    %122 = vmatpush2.msra.mxu0 0.0
    %123 = vmatprep.subr.mxu0 0.0
    %124 = vmatpush2.msra.mxu0 0.0
    %125 = vmatprep.subr.mxu0 0.0
    %126 = vmatpush2.msra.mxu0 0.0
    %127 = vmatprep.subr.mxu0 0.0
    %128 = vmatpush2.msra.mxu0 0.0
    %129 = vmatprep.mubr.f32.mxu0 0.0
    %130 = vmatmul.mubr.f32.gmra.mxu0 %v41
    %v131 = vpop.f32.mrf.mxu0
    %v132 = vadd.f32 %v63, %v131
    %v133 = vpop.f32.mrf.mxu0
    %134 = vdwg.mxu0
    %v135 = vmax.f32 %v132, 0.0
    %136 = vmatprep.subr.mxu0 0.0
    %137 = vmatpush1.msra.mxu0 %v57
    %138 = vmatprep.subr.mxu0 0.0
    %139 = vmatpush1.msra.mxu0 %v56
    %140 = vmatprep.subr.mxu0 0.0
    %141 = vmatpush1.msra.mxu0 %v55
    %142 = vmatprep.subr.mxu0 0.0
    %143 = vmatpush1.msra.mxu0 %v54
    %144 = vmatprep.subr.mxu0 0.0
    %145 = vmatpush1.msra.mxu0 %v53
    %146 = vmatprep.subr.mxu0 0.0
    %147 = vmatpush1.msra.mxu0 %v52
    %148 = vmatprep.subr.mxu0 0.0
    %149 = vmatpush1.msra.mxu0 %v51
    %150 = vmatprep.subr.mxu0 0.0
    %151 = vmatpush1.msra.mxu0 %v50
    %152 = vmatprep.subr.mxu0 0.0
    %153 = vmatpush1.msra.mxu0 %v49
    %154 = vmatprep.subr.mxu0 0.0
    %155 = vmatpush1.msra.mxu0 %v48
    %156 = vmatprep.subr.mxu0 0.0
    %157 = vmatpush1.msra.mxu0 %v47
    %158 = vmatprep.subr.mxu0 0.0
    %159 = vmatpush1.msra.mxu0 %v46
    %160 = vmatprep.subr.mxu0 0.0
    %161 = vmatpush1.msra.mxu0 %v45
    %162 = vmatprep.subr.mxu0 0.0
    %163 = vmatpush1.msra.mxu0 %v44
    %164 = vmatprep.subr.mxu0 0.0
    %165 = vmatpush1.msra.mxu0 %v43
    %166 = vmatprep.subr.mxu0 0.0
    %167 = vmatpush1.msra.mxu0 %v42
    %168 = vmatprep.subr.mxu0 0.0
    %169 = vmatpush2.msra.mxu0 0.0
    %170 = vmatprep.subr.mxu0 0.0
    %171 = vmatpush2.msra.mxu0 0.0
    %172 = vmatprep.subr.mxu0 0.0
    %173 = vmatpush2.msra.mxu0 0.0
    %174 = vmatprep.subr.mxu0 0.0
    %175 = vmatpush2.msra.mxu0 0.0
    %176 = vmatprep.subr.mxu0 0.0
    %177 = vmatpush2.msra.mxu0 0.0
    %178 = vmatprep.subr.mxu0 0.0
    %179 = vmatpush2.msra.mxu0 0.0
    %180 = vmatprep.subr.mxu0 0.0
    %181 = vmatpush2.msra.mxu0 0.0
    %182 = vmatprep.subr.mxu0 0.0
    %183 = vmatpush2.msra.mxu0 0.0
    %184 = vmatprep.subr.mxu0 0.0
    %185 = vmatpush2.msra.mxu0 0.0
    %186 = vmatprep.subr.mxu0 0.0
    %187 = vmatpush2.msra.mxu0 0.0
    %188 = vmatprep.subr.mxu0 0.0
    %189 = vmatpush2.msra.mxu0 0.0
    %190 = vmatprep.subr.mxu0 0.0
    %191 = vmatpush2.msra.mxu0 0.0
    %192 = vmatprep.subr.mxu0 0.0
    %193 = vmatpush2.msra.mxu0 0.0
    %194 = vmatprep.subr.mxu0 0.0
    %195 = vmatpush2.msra.mxu0 0.0
    %196 = vmatprep.subr.mxu0 0.0
    %197 = vmatpush2.msra.mxu0 0.0
    %198 = vmatprep.subr.mxu0 0.0
    %199 = vmatpush2.msra.mxu0 0.0
    %200 = vmatprep.mubr.f32.mxu0 0.0
    %201 = vmatmul.mubr.f32.gmra.mxu0 %v135
    %v202 = vpop.f32.mrf.mxu0
    %v203 = vadd.f32 %v63, %v202
    %v204 = vpop.f32.mrf.mxu0
    %205 = vdwg.mxu0
    %v206 = vmax.f32 %v203, 0.0
    %207 = vmatprep.subr.mxu0 0.0
    %208 = vmatpush1.msra.mxu0 %v57
    %209 = vmatprep.subr.mxu0 0.0
    %210 = vmatpush1.msra.mxu0 %v56
    %211 = vmatprep.subr.mxu0 0.0
    %212 = vmatpush1.msra.mxu0 %v55
    %213 = vmatprep.subr.mxu0 0.0
    %214 = vmatpush1.msra.mxu0 %v54
    %215 = vmatprep.subr.mxu0 0.0
    %216 = vmatpush1.msra.mxu0 %v53
    %217 = vmatprep.subr.mxu0 0.0
    %218 = vmatpush1.msra.mxu0 %v52
    %219 = vmatprep.subr.mxu0 0.0
    %220 = vmatpush1.msra.mxu0 %v51
    %221 = vmatprep.subr.mxu0 0.0
    %222 = vmatpush1.msra.mxu0 %v50
    %223 = vmatprep.subr.mxu0 0.0
    %224 = vmatpush1.msra.mxu0 %v49
    %225 = vmatprep.subr.mxu0 0.0
    %226 = vmatpush1.msra.mxu0 %v48
    %227 = vmatprep.subr.mxu0 0.0
    %228 = vmatpush1.msra.mxu0 %v47
    %229 = vmatprep.subr.mxu0 0.0
    %230 = vmatpush1.msra.mxu0 %v46
    %231 = vmatprep.subr.mxu0 0.0
    %232 = vmatpush1.msra.mxu0 %v45
    %233 = vmatprep.subr.mxu0 0.0
    %234 = vmatpush1.msra.mxu0 %v44
    %235 = vmatprep.subr.mxu0 0.0
    %236 = vmatpush1.msra.mxu0 %v43
    %237 = vmatprep.subr.mxu0 0.0
    %238 = vmatpush1.msra.mxu0 %v42
    %239 = vmatprep.subr.mxu0 0.0
    %240 = vmatpush2.msra.mxu0 0.0
    %241 = vmatprep.subr.mxu0 0.0
    %242 = vmatpush2.msra.mxu0 0.0
    %243 = vmatprep.subr.mxu0 0.0
    %244 = vmatpush2.msra.mxu0 0.0
    %245 = vmatprep.subr.mxu0 0.0
    %246 = vmatpush2.msra.mxu0 0.0
    %247 = vmatprep.subr.mxu0 0.0
    %248 = vmatpush2.msra.mxu0 0.0
    %249 = vmatprep.subr.mxu0 0.0
    %250 = vmatpush2.msra.mxu0 0.0
    %251 = vmatprep.subr.mxu0 0.0
    %252 = vmatpush2.msra.mxu0 0.0
    %253 = vmatprep.subr.mxu0 0.0
    %254 = vmatpush2.msra.mxu0 0.0
    %255 = vmatprep.subr.mxu0 0.0
    %256 = vmatpush2.msra.mxu0 0.0
    %257 = vmatprep.subr.mxu0 0.0
    %258 = vmatpush2.msra.mxu0 0.0
    %259 = vmatprep.subr.mxu0 0.0
    %260 = vmatpush2.msra.mxu0 0.0
    %261 = vmatprep.subr.mxu0 0.0
    %262 = vmatpush2.msra.mxu0 0.0
    %263 = vmatprep.subr.mxu0 0.0
    %264 = vmatpush2.msra.mxu0 0.0
    %265 = vmatprep.subr.mxu0 0.0
    %266 = vmatpush2.msra.mxu0 0.0
    %267 = vmatprep.subr.mxu0 0.0
    %268 = vmatpush2.msra.mxu0 0.0
    %269 = vmatprep.subr.mxu0 0.0
    %270 = vmatpush2.msra.mxu0 0.0
    %271 = vmatprep.mubr.f32.mxu0 0.0
    %272 = vmatmul.mubr.f32.gmra.mxu0 %v206
    %v273 = vpop.f32.mrf.mxu0
    %v274 = vadd.f32 %v63, %v273
    %v275 = vpop.f32.mrf.mxu0
    %276 = vdwg.mxu0
    %v277 = vadd.f32 %v274, %v41
    %v278 = vmax.f32 %v277, 0.0
    %279 = vst [vmem:[#allocation7] sm:$0xff] %v278
    // Predicated region
    $region22: #{tpu_custom_call.1} parent=1 // pred_check
      _
    $region23: #{tpu_custom_call.1} parent=1 // pred_check_branch
      %281 = sbr.rel (0) target = $region25
    $region24: #{tpu_custom_call.1} parent=1 // pred_region
      %s283 = ssub.s32 128, 128
      %284 = vsyncadd [#allocation4], %s283
      %s286 = sshll.u32 [#allocation7], 4
      %s287 = int_to_ptr.vmem [resolvable:$true] %s286
      %289 = dma.vmem_to_hbm [thread:$0]  %s287, 128, %s3, [#allocation4]
    $region25: #{tpu_custom_call.1} parent=1 // pred_fallthru
      _
    // Predicated region
    $region26: #{tpu_custom_call.1} parent=1 // pred_check
      _
    $region27: #{tpu_custom_call.1} parent=1 // pred_check_branch
      %291 = sbr.rel (0) target = $region29
    $region28: #{tpu_custom_call.1} parent=1 // pred_region
      %292 = dma.done [#allocation4], 128
    $region29: #{tpu_custom_call.1} parent=1 // pred_fallthru
      _
    %293 = vsyncpa [#allocation3], 1
    %294 = vsyncpa [#allocation6], 1
    %295 = vsyncpa [#allocation4], 1

</llo_original>
